<compile_context>
chip_gen: v6e
topology: v6e:2x2x1
jax: 0.10.0
libtpu: 0.0.40
codegen_flags: <defaults>
</compile_context>

<pallas_src>
import jax
import jax.numpy as jnp
from jax.experimental import pallas as pl
from jax.experimental.pallas import tpu as pltpu

# ----------------------------- problem sizes ------------------------------
NB_MOVIES = 64       # synthetic "nb_movies" (small, deterministic)
H1, H2 = 20, 10      # hidden widths from the module definition
BATCH = 256          # demo batch (tiled over the grid)

LANE = 128
TB = 128             # batch tile (rows per grid step)


def _round_up(n, m):
    return ((n + m - 1) // m) * m


M_PAD = _round_up(NB_MOVIES, LANE)   # 64  -> 128
H1_PAD = _round_up(H1, LANE)         # 20  -> 128
H2_PAD = _round_up(H2, LANE)         # 10  -> 128


# ------------------------------ Pallas kernel ------------------------------
def _sigmoid(x):
    # exp and approximate reciprocal both occupy the (otherwise idle) EUP slot.
    return pl.reciprocal(1.0 + jnp.exp(-x), approx=True)


def sae_kernel(x_ref,
               w1_ref, b1_ref,
               w2_ref, b2_ref,
               w3_ref, b3_ref,
               w4_ref, b4_ref,
               o_ref):
    """4-layer MLP on one (TB, M_PAD) batch tile; weights resident in VMEM."""
    x = x_ref[...]                                                   # bf16 [TB, M_PAD]

    h = jnp.dot(x, w1_ref[...], preferred_element_type=jnp.float32) + b1_ref[...]
    h = _sigmoid(h).astype(jnp.bfloat16)                             # [TB, H1_PAD]

    h = jnp.dot(h, w2_ref[...], preferred_element_type=jnp.float32) + b2_ref[...]
    h = _sigmoid(h).astype(jnp.bfloat16)                             # [TB, H2_PAD]

    h = jnp.dot(h, w3_ref[...], preferred_element_type=jnp.float32) + b3_ref[...]
    h = _sigmoid(h).astype(jnp.bfloat16)                             # [TB, H1_PAD]

    h = jnp.dot(h, w4_ref[...], preferred_element_type=jnp.float32) + b4_ref[...]
    o_ref[...] = h.astype(o_ref.dtype)                               # [TB, M_PAD]


# ------------------------------ wrapper ------------------------------------
def sae_forward(x, params, *, tb=TB):
    """x: [B, nb_movies] float32.  params: list of (Wi, bi) in [in,out]/[1,out]."""
    B, M = x.shape
    assert M == NB_MOVIES
    (w1, b1), (w2, b2), (w3, b3), (w4, b4) = params

    def pad2(a, r, c):
        return jnp.pad(a, ((0, r - a.shape[0]), (0, c - a.shape[1])))

    # Zero-pad to lane-dense shapes.  Padded activation lanes become
    # sigmoid(0)=0.5, but they only ever multiply zero-padded weight rows, so
    # the unpadded result region is preserved exactly.
    B_pad = _round_up(max(B, tb), tb)
    xp = pad2(x, B_pad, M_PAD).astype(jnp.bfloat16)
    w1p = pad2(w1, M_PAD, H1_PAD).astype(jnp.bfloat16)
    w2p = pad2(w2, H1_PAD, H2_PAD).astype(jnp.bfloat16)
    w3p = pad2(w3, H2_PAD, H1_PAD).astype(jnp.bfloat16)
    w4p = pad2(w4, H1_PAD, M_PAD).astype(jnp.bfloat16)
    b1p = pad2(b1, 1, H1_PAD)       # biases stay f32 (added post-accumulation)
    b2p = pad2(b2, 1, H2_PAD)
    b3p = pad2(b3, 1, H1_PAD)
    b4p = pad2(b4, 1, M_PAD)

    # Grid-invariant (resident) operands: block index never changes.
    resident = lambda a: pl.BlockSpec(a.shape, lambda i: (0, 0))

    out = pl.pallas_call(
        sae_kernel,
        out_shape=jax.ShapeDtypeStruct((B_pad, M_PAD), jnp.float32),
        grid_spec=pltpu.PrefetchScalarGridSpec(
            num_scalar_prefetch=0,
            grid=(B_pad // tb,),
            in_specs=[pl.BlockSpec((tb, M_PAD), lambda i: (i, 0)),
                      resident(w1p), resident(b1p),
                      resident(w2p), resident(b2p),
                      resident(w3p), resident(b3p),
                      resident(w4p), resident(b4p)],
            out_specs=pl.BlockSpec((tb, M_PAD), lambda i: (i, 0)),
        ),
        compiler_params=pltpu.CompilerParams(
            dimension_semantics=("parallel",),          # megacore-friendly (v7x)
            vmem_limit_bytes=64 * 1024 * 1024,
        ),
    )(xp, w1p, b1p, w2p, b2p, w3p, b3p, w4p, b4p)

    return out[:B, :NB_MOVIES]


# ------------------------- deterministic init ------------------------------
def init_params(key):
    """nn.Linear-style uniform(-1/sqrt(fan_in), 1/sqrt(fan_in)) init."""
    dims = [(NB_MOVIES, H1), (H1, H2), (H2, H1), (H1, NB_MOVIES)]
    params = []
    for (fan_in, fan_out) in dims:
        key, kw, kb = jax.random.split(key, 3)
        bound = 1.0 / jnp.sqrt(fan_in)
        w = jax.random.uniform(kw, (fan_in, fan_out), jnp.float32, -bound, bound)
        b = jax.random.uniform(kb, (1, fan_out), jnp.float32, -bound, bound)
        params.append((w, b))
    return params


# ------------------------------ reference ----------------------------------
def sae_ref(x, params):
    (w1, b1), (w2, b2), (w3, b3), (w4, b4) = params
    h = jax.nn.sigmoid(x @ w1 + b1)
    h = jax.nn.sigmoid(h @ w2 + b2)
    h = jax.nn.sigmoid(h @ w3 + b3)
    return h @ w4 + b4


if __name__ == "__main__":
    key = jax.random.PRNGKey(0)
    key, kx = jax.random.split(key)
    x = jax.random.uniform(kx, (BATCH, NB_MOVIES), jnp.float32, 0.0, 5.0)
    params = init_params(key)

    out = sae_forward(x, params)
    out = jax.block_until_ready(out)

    ref = sae_ref(x, params)
    assert out.shape == (BATCH, NB_MOVIES)
    # bf16 matmul operands + approx reciprocal -> relaxed tolerance vs f32 ref.
    max_err = float(jnp.max(jnp.abs(out - ref)))
    assert max_err < 0.1, f"mismatch vs reference (max abs err {max_err})"

    print("KERNEL_OK")
</pallas_src>

<mosaic_0001>
module attributes {stable_mosaic.version = 11 : i64} {
  func.func @sae_kernel(%arg0: i32, %arg1: memref<128x128xbf16, #tpu.memory_space<vmem>>, %arg2: memref<128x128xbf16, #tpu.memory_space<vmem>>, %arg3: memref<1x128xf32, #tpu.memory_space<vmem>>, %arg4: memref<128x128xbf16, #tpu.memory_space<vmem>>, %arg5: memref<1x128xf32, #tpu.memory_space<vmem>>, %arg6: memref<128x128xbf16, #tpu.memory_space<vmem>>, %arg7: memref<1x128xf32, #tpu.memory_space<vmem>>, %arg8: memref<128x128xbf16, #tpu.memory_space<vmem>>, %arg9: memref<1x128xf32, #tpu.memory_space<vmem>>, %arg10: memref<128x128xf32, #tpu.memory_space<vmem>>) attributes {dimension_semantics = [#tpu.dimension_semantics<parallel>], iteration_bounds = array<i64: 2>, scalar_prefetch = 0 : i64, scratch_operands = 0 : i64, tpu.core_type = #tpu.core_type<tc>, window_params = [{transform_indices = @transform_0, window_bounds = array<i64: 128, 128>}, {pipeline_mode = #tpu.pipeline_mode<synchronous>, transform_indices = @transform_1, window_bounds = array<i64: 128, 128>}, {pipeline_mode = #tpu.pipeline_mode<synchronous>, transform_indices = @transform_2, window_bounds = array<i64: 1, 128>}, {pipeline_mode = #tpu.pipeline_mode<synchronous>, transform_indices = @transform_3, window_bounds = array<i64: 128, 128>}, {pipeline_mode = #tpu.pipeline_mode<synchronous>, transform_indices = @transform_4, window_bounds = array<i64: 1, 128>}, {pipeline_mode = #tpu.pipeline_mode<synchronous>, transform_indices = @transform_5, window_bounds = array<i64: 128, 128>}, {pipeline_mode = #tpu.pipeline_mode<synchronous>, transform_indices = @transform_6, window_bounds = array<i64: 1, 128>}, {pipeline_mode = #tpu.pipeline_mode<synchronous>, transform_indices = @transform_7, window_bounds = array<i64: 128, 128>}, {pipeline_mode = #tpu.pipeline_mode<synchronous>, transform_indices = @transform_8, window_bounds = array<i64: 1, 128>}, {transform_indices = @transform_9, window_bounds = array<i64: 128, 128>}]} {
    %c0 = arith.constant 0 : index
    %c0_0 = arith.constant 0 : index
    %0 = vector.load %arg1[%c0, %c0_0] : memref<128x128xbf16, #tpu.memory_space<vmem>>, vector<128x128xbf16>
    %c0_1 = arith.constant 0 : index
    %c0_2 = arith.constant 0 : index
    %1 = vector.load %arg2[%c0_1, %c0_2] : memref<128x128xbf16, #tpu.memory_space<vmem>>, vector<128x128xbf16>
    %cst = arith.constant dense<0.000000e+00> : vector<128x128xf32>
    %2 = tpu.matmul %0, %1, %cst {dimension_numbers = #tpu.dot_dimension_numbers<[1], [0], [0], [1], [0, 0, 1, 1], [], []>} : vector<128x128xbf16>, vector<128x128xbf16>, vector<128x128xf32> -> vector<128x128xf32>
    %c0_3 = arith.constant 0 : index
    %c0_4 = arith.constant 0 : index
    %3 = vector.load %arg3[%c0_3, %c0_4] : memref<1x128xf32, #tpu.memory_space<vmem>>, vector<1x128xf32>
    %4 = vector.broadcast %3 : vector<1x128xf32> to vector<128x128xf32>
    %5 = arith.addf %2, %4 : vector<128x128xf32>
    %cst_5 = arith.constant 0.000000e+00 : f32
    %6 = vector.broadcast %cst_5 : f32 to vector<128x128xf32>
    %7 = arith.subf %6, %5 : vector<128x128xf32>
    %8 = math.exp %7 : vector<128x128xf32>
    %cst_6 = arith.constant 1.000000e+00 : f32
    %9 = vector.broadcast %cst_6 : f32 to vector<128x128xf32>
    %10 = arith.addf %9, %8 : vector<128x128xf32>
    %11 = tpu.reciprocal %10 {approx = true} : vector<128x128xf32> -> vector<128x128xf32>
    %12 = arith.truncf %11 : vector<128x128xf32> to vector<128x128xbf16>
    %c0_7 = arith.constant 0 : index
    %c0_8 = arith.constant 0 : index
    %13 = vector.load %arg4[%c0_7, %c0_8] : memref<128x128xbf16, #tpu.memory_space<vmem>>, vector<128x128xbf16>
    %cst_9 = arith.constant dense<0.000000e+00> : vector<128x128xf32>
    %14 = tpu.matmul %12, %13, %cst_9 {dimension_numbers = #tpu.dot_dimension_numbers<[1], [0], [0], [1], [0, 0, 1, 1], [], []>} : vector<128x128xbf16>, vector<128x128xbf16>, vector<128x128xf32> -> vector<128x128xf32>
    %c0_10 = arith.constant 0 : index
    %c0_11 = arith.constant 0 : index
    %15 = vector.load %arg5[%c0_10, %c0_11] : memref<1x128xf32, #tpu.memory_space<vmem>>, vector<1x128xf32>
    %16 = vector.broadcast %15 : vector<1x128xf32> to vector<128x128xf32>
    %17 = arith.addf %14, %16 : vector<128x128xf32>
    %cst_12 = arith.constant 0.000000e+00 : f32
    %18 = vector.broadcast %cst_12 : f32 to vector<128x128xf32>
    %19 = arith.subf %18, %17 : vector<128x128xf32>
    %20 = math.exp %19 : vector<128x128xf32>
    %cst_13 = arith.constant 1.000000e+00 : f32
    %21 = vector.broadcast %cst_13 : f32 to vector<128x128xf32>
    %22 = arith.addf %21, %20 : vector<128x128xf32>
    %23 = tpu.reciprocal %22 {approx = true} : vector<128x128xf32> -> vector<128x128xf32>
    %24 = arith.truncf %23 : vector<128x128xf32> to vector<128x128xbf16>
    %c0_14 = arith.constant 0 : index
    %c0_15 = arith.constant 0 : index
    %25 = vector.load %arg6[%c0_14, %c0_15] : memref<128x128xbf16, #tpu.memory_space<vmem>>, vector<128x128xbf16>
    %cst_16 = arith.constant dense<0.000000e+00> : vector<128x128xf32>
    %26 = tpu.matmul %24, %25, %cst_16 {dimension_numbers = #tpu.dot_dimension_numbers<[1], [0], [0], [1], [0, 0, 1, 1], [], []>} : vector<128x128xbf16>, vector<128x128xbf16>, vector<128x128xf32> -> vector<128x128xf32>
    %c0_17 = arith.constant 0 : index
    %c0_18 = arith.constant 0 : index
    %27 = vector.load %arg7[%c0_17, %c0_18] : memref<1x128xf32, #tpu.memory_space<vmem>>, vector<1x128xf32>
    %28 = vector.broadcast %27 : vector<1x128xf32> to vector<128x128xf32>
    %29 = arith.addf %26, %28 : vector<128x128xf32>
    %cst_19 = arith.constant 0.000000e+00 : f32
    %30 = vector.broadcast %cst_19 : f32 to vector<128x128xf32>
    %31 = arith.subf %30, %29 : vector<128x128xf32>
    %32 = math.exp %31 : vector<128x128xf32>
    %cst_20 = arith.constant 1.000000e+00 : f32
    %33 = vector.broadcast %cst_20 : f32 to vector<128x128xf32>
    %34 = arith.addf %33, %32 : vector<128x128xf32>
    %35 = tpu.reciprocal %34 {approx = true} : vector<128x128xf32> -> vector<128x128xf32>
    %36 = arith.truncf %35 : vector<128x128xf32> to vector<128x128xbf16>
    %c0_21 = arith.constant 0 : index
    %c0_22 = arith.constant 0 : index
    %37 = vector.load %arg8[%c0_21, %c0_22] : memref<128x128xbf16, #tpu.memory_space<vmem>>, vector<128x128xbf16>
    %cst_23 = arith.constant dense<0.000000e+00> : vector<128x128xf32>
    %38 = tpu.matmul %36, %37, %cst_23 {dimension_numbers = #tpu.dot_dimension_numbers<[1], [0], [0], [1], [0, 0, 1, 1], [], []>} : vector<128x128xbf16>, vector<128x128xbf16>, vector<128x128xf32> -> vector<128x128xf32>
    %c0_24 = arith.constant 0 : index
    %c0_25 = arith.constant 0 : index
    %39 = vector.load %arg9[%c0_24, %c0_25] : memref<1x128xf32, #tpu.memory_space<vmem>>, vector<1x128xf32>
    %40 = vector.broadcast %39 : vector<1x128xf32> to vector<128x128xf32>
    %41 = arith.addf %38, %40 : vector<128x128xf32>
    %c0_26 = arith.constant 0 : index
    %c0_27 = arith.constant 0 : index
    %42 = vector.load %arg10[%c0_26, %c0_27] : memref<128x128xf32, #tpu.memory_space<vmem>>, vector<128x128xf32>
    tpu.vector_store %arg10[%c0_26, %c0_27], %41 {strides = array<i32>} : memref<128x128xf32, #tpu.memory_space<vmem>>, vector<128x128xf32>,
    return
  }
  func.func @transform_0(%arg0: i32) -> (i32, i32) {
    %c0_i32 = arith.constant 0 : i32
    %c0_i32_0 = arith.constant 0 : i32
    return %arg0, %c0_i32 : i32, i32
  }
  func.func @transform_1(%arg0: i32) -> (i32, i32) {
    %c0_i32 = arith.constant 0 : i32
    %c0_i32_0 = arith.constant 0 : i32
    %c0_i32_1 = arith.constant 0 : i32
    return %c0_i32, %c0_i32_0 : i32, i32
  }
  func.func @transform_2(%arg0: i32) -> (i32, i32) {
    %c0_i32 = arith.constant 0 : i32
    %c0_i32_0 = arith.constant 0 : i32
    %c0_i32_1 = arith.constant 0 : i32
    return %c0_i32, %c0_i32_0 : i32, i32
  }
  func.func @transform_3(%arg0: i32) -> (i32, i32) {
    %c0_i32 = arith.constant 0 : i32
    %c0_i32_0 = arith.constant 0 : i32
    %c0_i32_1 = arith.constant 0 : i32
    return %c0_i32, %c0_i32_0 : i32, i32
  }
  func.func @transform_4(%arg0: i32) -> (i32, i32) {
    %c0_i32 = arith.constant 0 : i32
    %c0_i32_0 = arith.constant 0 : i32
    %c0_i32_1 = arith.constant 0 : i32
    return %c0_i32, %c0_i32_0 : i32, i32
  }
  func.func @transform_5(%arg0: i32) -> (i32, i32) {
    %c0_i32 = arith.constant 0 : i32
    %c0_i32_0 = arith.constant 0 : i32
    %c0_i32_1 = arith.constant 0 : i32
    return %c0_i32, %c0_i32_0 : i32, i32
  }
  func.func @transform_6(%arg0: i32) -> (i32, i32) {
    %c0_i32 = arith.constant 0 : i32
    %c0_i32_0 = arith.constant 0 : i32
    %c0_i32_1 = arith.constant 0 : i32
    return %c0_i32, %c0_i32_0 : i32, i32
  }
  func.func @transform_7(%arg0: i32) -> (i32, i32) {
    %c0_i32 = arith.constant 0 : i32
    %c0_i32_0 = arith.constant 0 : i32
    %c0_i32_1 = arith.constant 0 : i32
    return %c0_i32, %c0_i32_0 : i32, i32
  }
  func.func @transform_8(%arg0: i32) -> (i32, i32) {
    %c0_i32 = arith.constant 0 : i32
    %c0_i32_0 = arith.constant 0 : i32
    %c0_i32_1 = arith.constant 0 : i32
    return %c0_i32, %c0_i32_0 : i32, i32
  }
  func.func @transform_9(%arg0: i32) -> (i32, i32) {
    %c0_i32 = arith.constant 0 : i32
    %c0_i32_0 = arith.constant 0 : i32
    return %arg0, %c0_i32 : i32, i32
  }
}

</mosaic_0001>

<llo_original>
// kernel: tpu_custom_call.1
$region0: #{tpu_custom_call.1}
  #allocation0 [shape = 'u32[]', space=smem, size = 0x4, offset = 0x4, fixed_abs, tag = 'smem constant byte address 0x4 - core index']
  #allocation1 [shape = 'u32[144,128]{1,0:T(1,128)}', space=vmem, size = 0x12000, scoped, tag = 'internal scratch']
  %s0 = inlined_call_operand.hbm [shape: bf16[256,128], index: 0, kind: input, shape index: {}]
  %s1 = inlined_call_operand.hbm [shape: bf16[128,128], index: 1, kind: input, shape index: {}]
  %s2 = inlined_call_operand.vmem [shape: f32[1,128], index: 2, kind: input, shape index: {}]
  %s3 = inlined_call_operand.hbm [shape: bf16[128,128], index: 3, kind: input, shape index: {}]
  %s4 = inlined_call_operand.vmem [shape: f32[1,128], index: 4, kind: input, shape index: {}]
  %s5 = inlined_call_operand.hbm [shape: bf16[128,128], index: 5, kind: input, shape index: {}]
  %s6 = inlined_call_operand.vmem [shape: f32[1,128], index: 6, kind: input, shape index: {}]
  %s7 = inlined_call_operand.hbm [shape: bf16[128,128], index: 7, kind: input, shape index: {}]
  %s8 = inlined_call_operand.vmem [shape: f32[1,128], index: 8, kind: input, shape index: {}]
  %s9 = inlined_call_operand.hbm [shape: f32[256,128], index: 9, kind: output, shape index: {}]
  %s10 = sld [smem:[#allocation0]]
  $region89: #{tpu_custom_call.1} parent=0
    _
  %s12 = ssub.s32 1, %s10
  %s13 = scalar_select 0, %s12, %s10
  $region1: #{tpu_custom_call.1} parent=0
    #allocation2 [shape = 'u8[65536]{0}', space=vmem, size = 0x10000, scoped, tag = 'input window, operand 0']
    #allocation3 [shape = 's32[2]{0}', space=sflag, size = 0x8, scoped, tag = 'scoped memory for tpu_custom_call.1']
    #allocation4 [shape = 's32[2]{0}', space=sflag, size = 0x8, scoped, tag = 'scoped memory for tpu_custom_call.1']
    #allocation5 [shape = 'u8[32768]{0}', space=vmem, size = 0x8000, scoped, tag = 'input window, operand 1, single buffered']
    #allocation6 [shape = 's32[1]{0}', space=sflag, size = 0x4, scoped, tag = 'scoped memory for tpu_custom_call.1']
    #allocation7 [shape = 'u8[32768]{0}', space=vmem, size = 0x8000, scoped, tag = 'input window, operand 3, single buffered']
    #allocation8 [shape = 'u8[32768]{0}', space=vmem, size = 0x8000, scoped, tag = 'input window, operand 5, single buffered']
    #allocation9 [shape = 's32[1]{0}', space=sflag, size = 0x4, scoped, tag = 'scoped memory for tpu_custom_call.1']
    #allocation10 [shape = 'u8[32768]{0}', space=vmem, size = 0x8000, scoped, tag = 'input window, operand 7, single buffered']
    #allocation11 [shape = 'u8[131072]{0}', space=vmem, size = 0x20000, scoped, tag = 'output window, operand 0']
    %14 = vsyncpa [#allocation3], 0
    %s15 = scalar_lea.sflag [#allocation3], 1
    %16 = vsyncpa %s15, 0
    %17 = vsyncpa [#allocation6], 0
    %18 = vsyncpa [#allocation9], 0
    %19 = vsyncpa [#allocation4], 0
    %s20 = scalar_lea.sflag [#allocation4], 1
    %21 = vsyncpa %s20, 0
    loop: start=0, step=1, limit=4
    $region2: #{tpu_custom_call.1} parent=1 // loop_pre_header
      _
    $region3: #{tpu_custom_call.1} parent=1 // loop_header
      %s23 = sphi 0, %s27
      %p24 = scmp.ge.s32.totalorder %s23, 4
      %s33 = sphi 0, %s35
      %s36 = sphi 0, %s33
      %s37 = sphi 0, %s36
      %s53 = sphi 0, %s37
      %s57 = sphi 0, %s57
      %s59 = sphi 0, %s57
      %s60 = sphi 0, %s59
      %s74 = sphi 0, %s60
      %s78 = sphi 0, %s78
      %s80 = sphi 0, %s78
      %s81 = sphi 0, %s80
      %s95 = sphi 0, %s81
      %s99 = sphi 0, %s99
      %s101 = sphi 0, %s99
      %s102 = sphi 0, %s101
      %s116 = sphi 0, %s102
      %s120 = sphi 0, %s120
      %s122 = sphi 0, %s120
      %s123 = sphi 0, %s122
      %s137 = sphi 0, %s123
      %s141 = sphi 0, %s141
      %s143 = sphi 0, %s141
      %s144 = sphi 0, %s143
      %s158 = sphi 0, %s144
      %s162 = sphi 0, %s162
      %s164 = sphi 0, %s162
      %s165 = sphi 0, %s164
      %s179 = sphi 0, %s165
      %s183 = sphi 0, %s183
      %s185 = sphi 0, %s183
      %s186 = sphi 0, %s185
      %s200 = sphi 0, %s186
      %s204 = sphi 0, %s204
      %s206 = sphi 0, %s204
      %s207 = sphi 0, %s206
      %s221 = sphi 0, %s207
      %s227 = sphi 0, %s229
      %s230 = sphi 0, %s227
      %s231 = sphi 0, %s230
      %s247 = sphi 0, %s231
    $region4: #{tpu_custom_call.1} parent=1 // loop_header_branch
      %26 = sbr.rel (%p24) target = $region8
    $region5: #{tpu_custom_call.1} parent=1 // loop_body
      %s28 = ssub.s32 %s23, 1
      %s29 = ssub.s32 %s23, 2
      %s30 = sadd.s32 %s23, 1
      %s31 = ssub.s32 %s23, %s30
      %p32 = scmp.eq.s32.totalorder %s31, 0
      %s34 = sadd.s32 %s33, 1
      %s35 = scalar_select %p32, %s33, %s34
      %p38 = pneg %p32
      %p39 = scmp.eq.s32.totalorder %s23, 1
      %p40 = por %p38, %p39
      %p41 = scmp.ne.s32.totalorder %s33, %s36
      %p42 = scmp.eq.s32.totalorder %s23, 0
      %p43 = por %p41, %p42
      %p44 = scmp.ne.s32.totalorder %s33, %s36
      %p45 = scmp.eq.s32.totalorder %s28, 1
      %p46 = por %p44, %p45
      %p47 = scmp.ne.s32.totalorder %s36, %s37
      %p48 = scmp.eq.s32.totalorder %s28, 0
      %p49 = por %p47, %p48
      %p50 = scmp.ne.s32.totalorder %s36, %s37
      %p51 = scmp.eq.s32.totalorder %s29, 1
      %p52 = por %p50, %p51
      %p54 = scmp.ne.s32.totalorder %s37, %s53
      %p55 = scmp.eq.s32.totalorder %s29, 0
      %p56 = por %p54, %p55
      %s58 = sadd.s32 %s57, 1
      %p61 = scmp.eq.s32.totalorder %s23, 1
      %p62 = scmp.ne.s32.totalorder %s57, %s59
      %p63 = scmp.eq.s32.totalorder %s23, 0
      %p64 = por %p62, %p63
      %p65 = scmp.ne.s32.totalorder %s57, %s59
      %p66 = scmp.eq.s32.totalorder %s28, 1
      %p67 = por %p65, %p66
      %p68 = scmp.ne.s32.totalorder %s59, %s60
      %p69 = scmp.eq.s32.totalorder %s28, 0
      %p70 = por %p68, %p69
      %p71 = scmp.ne.s32.totalorder %s59, %s60
      %p72 = scmp.eq.s32.totalorder %s29, 1
      %p73 = por %p71, %p72
      %p75 = scmp.ne.s32.totalorder %s60, %s74
      %p76 = scmp.eq.s32.totalorder %s29, 0
      %p77 = por %p75, %p76
      %s79 = sadd.s32 %s78, 1
      %p82 = scmp.eq.s32.totalorder %s23, 1
      %p83 = scmp.ne.s32.totalorder %s78, %s80
      %p84 = scmp.eq.s32.totalorder %s23, 0
      %p85 = por %p83, %p84
      %p86 = scmp.ne.s32.totalorder %s78, %s80
      %p87 = scmp.eq.s32.totalorder %s28, 1
      %p88 = por %p86, %p87
      %p89 = scmp.ne.s32.totalorder %s80, %s81
      %p90 = scmp.eq.s32.totalorder %s28, 0
      %p91 = por %p89, %p90
      %p92 = scmp.ne.s32.totalorder %s80, %s81
      %p93 = scmp.eq.s32.totalorder %s29, 1
      %p94 = por %p92, %p93
      %p96 = scmp.ne.s32.totalorder %s81, %s95
      %p97 = scmp.eq.s32.totalorder %s29, 0
      %p98 = por %p96, %p97
      %s100 = sadd.s32 %s99, 1
      %p103 = scmp.eq.s32.totalorder %s23, 1
      %p104 = scmp.ne.s32.totalorder %s99, %s101
      %p105 = scmp.eq.s32.totalorder %s23, 0
      %p106 = por %p104, %p105
      %p107 = scmp.ne.s32.totalorder %s99, %s101
      %p108 = scmp.eq.s32.totalorder %s28, 1
      %p109 = por %p107, %p108
      %p110 = scmp.ne.s32.totalorder %s101, %s102
      %p111 = scmp.eq.s32.totalorder %s28, 0
      %p112 = por %p110, %p111
      %p113 = scmp.ne.s32.totalorder %s101, %s102
      %p114 = scmp.eq.s32.totalorder %s29, 1
      %p115 = por %p113, %p114
      %p117 = scmp.ne.s32.totalorder %s102, %s116
      %p118 = scmp.eq.s32.totalorder %s29, 0
      %p119 = por %p117, %p118
      %s121 = sadd.s32 %s120, 1
      %p124 = scmp.eq.s32.totalorder %s23, 1
      %p125 = scmp.ne.s32.totalorder %s120, %s122
      %p126 = scmp.eq.s32.totalorder %s23, 0
      %p127 = por %p125, %p126
      %p128 = scmp.ne.s32.totalorder %s120, %s122
      %p129 = scmp.eq.s32.totalorder %s28, 1
      %p130 = por %p128, %p129
      %p131 = scmp.ne.s32.totalorder %s122, %s123
      %p132 = scmp.eq.s32.totalorder %s28, 0
      %p133 = por %p131, %p132
      %p134 = scmp.ne.s32.totalorder %s122, %s123
      %p135 = scmp.eq.s32.totalorder %s29, 1
      %p136 = por %p134, %p135
      %p138 = scmp.ne.s32.totalorder %s123, %s137
      %p139 = scmp.eq.s32.totalorder %s29, 0
      %p140 = por %p138, %p139
      %s142 = sadd.s32 %s141, 1
      %p145 = scmp.eq.s32.totalorder %s23, 1
      %p146 = scmp.ne.s32.totalorder %s141, %s143
      %p147 = scmp.eq.s32.totalorder %s23, 0
      %p148 = por %p146, %p147
      %p149 = scmp.ne.s32.totalorder %s141, %s143
      %p150 = scmp.eq.s32.totalorder %s28, 1
      %p151 = por %p149, %p150
      %p152 = scmp.ne.s32.totalorder %s143, %s144
      %p153 = scmp.eq.s32.totalorder %s28, 0
      %p154 = por %p152, %p153
      %p155 = scmp.ne.s32.totalorder %s143, %s144
      %p156 = scmp.eq.s32.totalorder %s29, 1
      %p157 = por %p155, %p156
      %p159 = scmp.ne.s32.totalorder %s144, %s158
      %p160 = scmp.eq.s32.totalorder %s29, 0
      %p161 = por %p159, %p160
      %s163 = sadd.s32 %s162, 1
      %p166 = scmp.eq.s32.totalorder %s23, 1
      %p167 = scmp.ne.s32.totalorder %s162, %s164
      %p168 = scmp.eq.s32.totalorder %s23, 0
      %p169 = por %p167, %p168
      %p170 = scmp.ne.s32.totalorder %s162, %s164
      %p171 = scmp.eq.s32.totalorder %s28, 1
      %p172 = por %p170, %p171
      %p173 = scmp.ne.s32.totalorder %s164, %s165
      %p174 = scmp.eq.s32.totalorder %s28, 0
      %p175 = por %p173, %p174
      %p176 = scmp.ne.s32.totalorder %s164, %s165
      %p177 = scmp.eq.s32.totalorder %s29, 1
      %p178 = por %p176, %p177
      %p180 = scmp.ne.s32.totalorder %s165, %s179
      %p181 = scmp.eq.s32.totalorder %s29, 0
      %p182 = por %p180, %p181
      %s184 = sadd.s32 %s183, 1
      %p187 = scmp.eq.s32.totalorder %s23, 1
      %p188 = scmp.ne.s32.totalorder %s183, %s185
      %p189 = scmp.eq.s32.totalorder %s23, 0
      %p190 = por %p188, %p189
      %p191 = scmp.ne.s32.totalorder %s183, %s185
      %p192 = scmp.eq.s32.totalorder %s28, 1
      %p193 = por %p191, %p192
      %p194 = scmp.ne.s32.totalorder %s185, %s186
      %p195 = scmp.eq.s32.totalorder %s28, 0
      %p196 = por %p194, %p195
      %p197 = scmp.ne.s32.totalorder %s185, %s186
      %p198 = scmp.eq.s32.totalorder %s29, 1
      %p199 = por %p197, %p198
      %p201 = scmp.ne.s32.totalorder %s186, %s200
      %p202 = scmp.eq.s32.totalorder %s29, 0
      %p203 = por %p201, %p202
      %s205 = sadd.s32 %s204, 1
      %p208 = scmp.eq.s32.totalorder %s23, 1
      %p209 = scmp.ne.s32.totalorder %s204, %s206
      %p210 = scmp.eq.s32.totalorder %s23, 0
      %p211 = por %p209, %p210
      %p212 = scmp.ne.s32.totalorder %s204, %s206
      %p213 = scmp.eq.s32.totalorder %s28, 1
      %p214 = por %p212, %p213
      %p215 = scmp.ne.s32.totalorder %s206, %s207
      %p216 = scmp.eq.s32.totalorder %s28, 0
      %p217 = por %p215, %p216
      %p218 = scmp.ne.s32.totalorder %s206, %s207
      %p219 = scmp.eq.s32.totalorder %s29, 1
      %p220 = por %p218, %p219
      %p222 = scmp.ne.s32.totalorder %s207, %s221
      %p223 = scmp.eq.s32.totalorder %s29, 0
      %p224 = por %p222, %p223
      %s225 = ssub.s32 %s23, %s30
      %p226 = scmp.eq.s32.totalorder %s225, 0
      %s228 = sadd.s32 %s227, 1
      %s229 = scalar_select %p226, %s227, %s228
      %p232 = pneg %p226
      %p233 = scmp.eq.s32.totalorder %s23, 1
      %p234 = por %p232, %p233
      %p235 = scmp.ne.s32.totalorder %s227, %s230
      %p236 = scmp.eq.s32.totalorder %s23, 0
      %p237 = por %p235, %p236
      %p238 = scmp.ne.s32.totalorder %s227, %s230
      %p239 = scmp.eq.s32.totalorder %s28, 1
      %p240 = por %p238, %p239
      %p241 = scmp.ne.s32.totalorder %s230, %s231
      %p242 = scmp.eq.s32.totalorder %s28, 0
      %p243 = por %p241, %p242
      %p244 = scmp.ne.s32.totalorder %s230, %s231
      %p245 = scmp.eq.s32.totalorder %s29, 1
      %p246 = por %p244, %p245
      %p248 = scmp.ne.s32.totalorder %s231, %s247
      %p249 = scmp.eq.s32.totalorder %s29, 0
      %p250 = por %p248, %p249
      %p251 = scmp.le.s32.totalorder 1, %s23
      %p252 = scmp.lt.s32.totalorder %s23, 3
      %p253 = pnand %p251, %p252
      %p254 = pneg %p253
      // Predicated region
      $region9: #{tpu_custom_call.1} parent=5 // pred_check
        _
      $region10: #{tpu_custom_call.1} parent=5 // pred_check_branch
        %256 = sbr.rel (%p253) target = $region12
      $region11: #{tpu_custom_call.1} parent=5 // pred_region
        %s257 = ssub.s32 %s23, 1
        // Predicated region
        $region13: #{tpu_custom_call.1} parent=11 // pred_check
          %p258 = pneg %p70
        $region14: #{tpu_custom_call.1} parent=11 // pred_check_branch
          %260 = sbr.rel (%p258) target = $region16
        $region15: #{tpu_custom_call.1} parent=11 // pred_region
          %s262 = ssub.s32 1024, 1024
          %263 = vsyncadd [#allocation6], %s262
          %s264 = sshll.u32 [#allocation5], 4
          %s265 = int_to_ptr.vmem [resolvable:$true] %s264
          %270 = dma.hbm_to_vmem [thread:$0]  %s1, 1024, %s265, [#allocation6], 64, 64, 4
        $region16: #{tpu_custom_call.1} parent=11 // pred_fallthru
          _
        // Predicated region
        $region17: #{tpu_custom_call.1} parent=11 // pred_check
          %p271 = pneg %p91
        $region18: #{tpu_custom_call.1} parent=11 // pred_check_branch
          %273 = sbr.rel (%p271) target = $region20
        $region19: #{tpu_custom_call.1} parent=11 // pred_region
          _
        $region20: #{tpu_custom_call.1} parent=11 // pred_fallthru
          _
        // Predicated region
        $region21: #{tpu_custom_call.1} parent=11 // pred_check
          %p274 = pneg %p112
        $region22: #{tpu_custom_call.1} parent=11 // pred_check_branch
          %276 = sbr.rel (%p274) target = $region24
        $region23: #{tpu_custom_call.1} parent=11 // pred_region
          %s278 = ssub.s32 1024, 1024
          %279 = vsyncadd [#allocation6], %s278
          %s280 = sshll.u32 [#allocation7], 4
          %s281 = int_to_ptr.vmem [resolvable:$true] %s280
          %286 = dma.hbm_to_vmem [thread:$0]  %s3, 1024, %s281, [#allocation6], 64, 64, 4
        $region24: #{tpu_custom_call.1} parent=11 // pred_fallthru
          _
        // Predicated region
        $region25: #{tpu_custom_call.1} parent=11 // pred_check
          %p287 = pneg %p133
        $region26: #{tpu_custom_call.1} parent=11 // pred_check_branch
          %289 = sbr.rel (%p287) target = $region28
        $region27: #{tpu_custom_call.1} parent=11 // pred_region
          _
        $region28: #{tpu_custom_call.1} parent=11 // pred_fallthru
          _
        // Predicated region
        $region29: #{tpu_custom_call.1} parent=11 // pred_check
          %p290 = pneg %p154
        $region30: #{tpu_custom_call.1} parent=11 // pred_check_branch
          %292 = sbr.rel (%p290) target = $region32
        $region31: #{tpu_custom_call.1} parent=11 // pred_region
          %s294 = ssub.s32 1024, 1024
          %295 = vsyncadd [#allocation9], %s294
          %s296 = sshll.u32 [#allocation8], 4
          %s297 = int_to_ptr.vmem [resolvable:$true] %s296
          %302 = dma.hbm_to_vmem [thread:$0]  %s5, 1024, %s297, [#allocation9], 64, 64, 4
        $region32: #{tpu_custom_call.1} parent=11 // pred_fallthru
          _
        // Predicated region
        $region33: #{tpu_custom_call.1} parent=11 // pred_check
          %p303 = pneg %p175
        $region34: #{tpu_custom_call.1} parent=11 // pred_check_branch
          %305 = sbr.rel (%p303) target = $region36
        $region35: #{tpu_custom_call.1} parent=11 // pred_region
          _
        $region36: #{tpu_custom_call.1} parent=11 // pred_fallthru
          _
        // Predicated region
        $region37: #{tpu_custom_call.1} parent=11 // pred_check
          %p306 = pneg %p196
        $region38: #{tpu_custom_call.1} parent=11 // pred_check_branch
          %308 = sbr.rel (%p306) target = $region40
        $region39: #{tpu_custom_call.1} parent=11 // pred_region
          %s310 = ssub.s32 1024, 1024
          %311 = vsyncadd [#allocation9], %s310
          %s312 = sshll.u32 [#allocation10], 4
          %s313 = int_to_ptr.vmem [resolvable:$true] %s312
          %318 = dma.hbm_to_vmem [thread:$0]  %s7, 1024, %s313, [#allocation9], 64, 64, 4
        $region40: #{tpu_custom_call.1} parent=11 // pred_fallthru
          _
        // Predicated region
        $region41: #{tpu_custom_call.1} parent=11 // pred_check
          %p319 = pneg %p217
        $region42: #{tpu_custom_call.1} parent=11 // pred_check_branch
          %321 = sbr.rel (%p319) target = $region44
        $region43: #{tpu_custom_call.1} parent=11 // pred_region
          _
        $region44: #{tpu_custom_call.1} parent=11 // pred_fallthru
          _
      $region12: #{tpu_custom_call.1} parent=5 // pred_fallthru
        _
      %p322 = scmp.lt.s32.totalorder %s23, 2
      // Predicated region
      $region45: #{tpu_custom_call.1} parent=5 // pred_check
        %p323 = pneg %p322
      $region46: #{tpu_custom_call.1} parent=5 // pred_check_branch
        %325 = sbr.rel (%p323) target = $region48
      $region47: #{tpu_custom_call.1} parent=5 // pred_region
        // Predicated region
        $region49: #{tpu_custom_call.1} parent=47 // pred_check
          %p326 = pneg %p43
        $region50: #{tpu_custom_call.1} parent=47 // pred_check_branch
          %328 = sbr.rel (%p326) target = $region52
        $region51: #{tpu_custom_call.1} parent=47 // pred_region
          %s329 = sand.u32 %s33, 1
          %s330 = scalar_lea.sflag [#allocation3], %s329
          %s331 = sand.u32 %s33, 1
          %s332 = smul.addr %s331, 64
          %s333 = scalar_lea.vmem [#allocation2], %s332
          %s334 = smul.u32 16, %s23
          %s336 = ssub.s32 1024, 1024
          %337 = vsyncadd %s330, %s336
          %s338 = smul.addr %s334, 64
          %s339 = scalar_lea.hbm %s0, %s338
          %s340 = sshll.u32 %s333, 4
          %s341 = int_to_ptr.vmem [resolvable:$true] %s340
          %346 = dma.hbm_to_vmem [thread:$0]  %s339, 1024, %s341, %s330, 64, 64, 4
        $region52: #{tpu_custom_call.1} parent=47 // pred_fallthru
          _
      $region48: #{tpu_custom_call.1} parent=5 // pred_fallthru
        _
      %p347 = scmp.le.s32.totalorder 1, %s23
      %p348 = scmp.lt.s32.totalorder %s23, 3
      %p349 = pnand %p347, %p348
      %p350 = pneg %p349
      // Predicated region
      $region53: #{tpu_custom_call.1} parent=5 // pred_check
        _
      $region54: #{tpu_custom_call.1} parent=5 // pred_check_branch
        %352 = sbr.rel (%p349) target = $region56
      $region55: #{tpu_custom_call.1} parent=5 // pred_region
        %s353 = ssub.s32 %s23, 1
        %s354 = sand.u32 %s36, 1
        %s355 = scalar_lea.sflag [#allocation3], %s354
        %s356 = sand.u32 %s36, 1
        %s357 = smul.addr %s356, 64
        %s358 = scalar_lea.vmem [#allocation2], %s357
        // Predicated region
        $region57: #{tpu_custom_call.1} parent=55 // pred_check
          %p359 = pneg %p49
        $region58: #{tpu_custom_call.1} parent=55 // pred_check_branch
          %361 = sbr.rel (%p359) target = $region60
        $region59: #{tpu_custom_call.1} parent=55 // pred_region
          %362 = dma.done %s355, 1024
        $region60: #{tpu_custom_call.1} parent=55 // pred_fallthru
          _
        // Predicated region
        $region61: #{tpu_custom_call.1} parent=55 // pred_check
          %p363 = pneg %p70
        $region62: #{tpu_custom_call.1} parent=55 // pred_check_branch
          %365 = sbr.rel (%p363) target = $region64
        $region63: #{tpu_custom_call.1} parent=55 // pred_region
          %366 = dma.done [#allocation6], 1024
        $region64: #{tpu_custom_call.1} parent=55 // pred_fallthru
          _
        // Predicated region
        $region65: #{tpu_custom_call.1} parent=55 // pred_check
          %p367 = pneg %p112
        $region66: #{tpu_custom_call.1} parent=55 // pred_check_branch
          %369 = sbr.rel (%p367) target = $region68
        $region67: #{tpu_custom_call.1} parent=55 // pred_region
          %370 = dma.done [#allocation6], 1024
        $region68: #{tpu_custom_call.1} parent=55 // pred_fallthru
          _
        // Predicated region
        $region69: #{tpu_custom_call.1} parent=55 // pred_check
          %p371 = pneg %p154
        $region70: #{tpu_custom_call.1} parent=55 // pred_check_branch
          %373 = sbr.rel (%p371) target = $region72
        $region71: #{tpu_custom_call.1} parent=55 // pred_region
          %374 = dma.done [#allocation9], 1024
        $region72: #{tpu_custom_call.1} parent=55 // pred_fallthru
          _
        // Predicated region
        $region73: #{tpu_custom_call.1} parent=55 // pred_check
          %p375 = pneg %p196
        $region74: #{tpu_custom_call.1} parent=55 // pred_check_branch
          %377 = sbr.rel (%p375) target = $region76
        $region75: #{tpu_custom_call.1} parent=55 // pred_region
          %378 = dma.done [#allocation9], 1024
        $region76: #{tpu_custom_call.1} parent=55 // pred_fallthru
          _
        %s379 = sand.u32 %s36, 1
        %s380 = scalar_lea.sflag [#allocation3], %s379
        %s381 = sand.u32 %s36, 1
        %s382 = smul.addr %s381, 64
        %s383 = scalar_lea.vmem [#allocation2], %s382
        %p384 = pneg %p49
        %p385 = pneg %p46
        %p386 = pneg %p70
        %p387 = pneg %p67
        %p388 = pneg %p91
        %p389 = pneg %p88
        %p390 = pneg %p112
        %p391 = pneg %p109
        %p392 = pneg %p133
        %p393 = pneg %p130
        %p394 = pneg %p154
        %p395 = pneg %p151
        %p396 = pneg %p175
        %p397 = pneg %p172
        %p398 = pneg %p196
        %p399 = pneg %p193
        %p400 = pneg %p217
        %p401 = pneg %p214
        %p402 = pneg %p243
        %p403 = pneg %p240
        %s404 = sand.u32 %s230, 1
        %s405 = scalar_lea.sflag [#allocation4], %s404
        %s406 = sand.u32 %s230, 1
        %s407 = smul.addr %s406, 128
        %s408 = scalar_lea.vmem [#allocation11], %s407
        %s409 = smul.u32 16, %s28
        %s410 = smul.u32 16, %s28
        %v412 = vld [vmem:[%s358] sm:$0xf]
        %v413 = vld [vmem:[%s358 + $0x4] sm:$0xf]
        %v414 = vld [vmem:[%s358 + $0x8] sm:$0xf]
        %v415 = vld [vmem:[%s358 + $0xc] sm:$0xf]
        %v416 = vld [vmem:[%s358 + $0x10] sm:$0xf]
        %v417 = vld [vmem:[%s358 + $0x14] sm:$0xf]
        %v418 = vld [vmem:[%s358 + $0x18] sm:$0xf]
        %v419 = vld [vmem:[%s358 + $0x1c] sm:$0xf]
        %v420 = vld [vmem:[%s358 + $0x20] sm:$0xf]
        %v421 = vld [vmem:[%s358 + $0x24] sm:$0xf]
        %v422 = vld [vmem:[%s358 + $0x28] sm:$0xf]
        %v423 = vld [vmem:[%s358 + $0x2c] sm:$0xf]
        %v424 = vld [vmem:[%s358 + $0x30] sm:$0xf]
        %v425 = vld [vmem:[%s358 + $0x34] sm:$0xf]
        %v426 = vld [vmem:[%s358 + $0x38] sm:$0xf]
        %v427 = vld [vmem:[%s358 + $0x3c] sm:$0xf]
        %v428 = vld [vmem:[#allocation5] sm:$0xf]
        %v429 = vld [vmem:[#allocation5 + $0x4] sm:$0xf]
        %v430 = vld [vmem:[#allocation5 + $0x8] sm:$0xf]
        %v431 = vld [vmem:[#allocation5 + $0xc] sm:$0xf]
        %v432 = vld [vmem:[#allocation5 + $0x10] sm:$0xf]
        %v433 = vld [vmem:[#allocation5 + $0x14] sm:$0xf]
        %v434 = vld [vmem:[#allocation5 + $0x18] sm:$0xf]
        %v435 = vld [vmem:[#allocation5 + $0x1c] sm:$0xf]
        %v436 = vld [vmem:[#allocation5 + $0x20] sm:$0xf]
        %v437 = vld [vmem:[#allocation5 + $0x24] sm:$0xf]
        %v438 = vld [vmem:[#allocation5 + $0x28] sm:$0xf]
        %v439 = vld [vmem:[#allocation5 + $0x2c] sm:$0xf]
        %v440 = vld [vmem:[#allocation5 + $0x30] sm:$0xf]
        %v441 = vld [vmem:[#allocation5 + $0x34] sm:$0xf]
        %v442 = vld [vmem:[#allocation5 + $0x38] sm:$0xf]
        %v443 = vld [vmem:[#allocation5 + $0x3c] sm:$0xf]
        %v444 = vld [vmem:[%s2] sm:$0x1]
        %v446 = vlaneseq
        %v447 = vshrl.u32 %v446, 7
        %v448 = vsub.s32 0, %v447
        %v449 = vrot.slane %v444, %v448
        %v467 = vunpack.c.l.b16 %v412
        %v468 = vunpack.c.l.b16 %v413
        %v469 = vunpack.c.l.b16 %v414
        %v470 = vunpack.c.l.b16 %v415
        %v471 = vunpack.c.l.b16 %v416
        %v472 = vunpack.c.l.b16 %v417
        %v473 = vunpack.c.l.b16 %v418
        %v474 = vunpack.c.l.b16 %v419
        %v475 = vunpack.c.l.b16 %v420
        %v476 = vunpack.c.l.b16 %v421
        %v477 = vunpack.c.l.b16 %v422
        %v478 = vunpack.c.l.b16 %v423
        %v479 = vunpack.c.l.b16 %v424
        %v480 = vunpack.c.l.b16 %v425
        %v481 = vunpack.c.l.b16 %v426
        %v482 = vunpack.c.l.b16 %v427
        %v483 = vpack.c.b16 %v468, %v467
        %v484 = vpack.c.b16 %v470, %v469
        %v485 = vpack.c.b16 %v472, %v471
        %v486 = vpack.c.b16 %v474, %v473
        %v487 = vpack.c.b16 %v476, %v475
        %v488 = vpack.c.b16 %v478, %v477
        %v489 = vpack.c.b16 %v480, %v479
        %v490 = vpack.c.b16 %v482, %v481
        %v515 = vunpack.c.l.b16 %v428
        %v516 = vunpack.c.l.b16 %v429
        %v517 = vunpack.c.l.b16 %v430
        %v518 = vunpack.c.l.b16 %v431
        %v519 = vunpack.c.l.b16 %v432
        %v520 = vunpack.c.l.b16 %v433
        %v521 = vunpack.c.l.b16 %v434
        %v522 = vunpack.c.l.b16 %v435
        %v523 = vunpack.c.l.b16 %v436
        %v524 = vunpack.c.l.b16 %v437
        %v525 = vunpack.c.l.b16 %v438
        %v526 = vunpack.c.l.b16 %v439
        %v527 = vunpack.c.l.b16 %v440
        %v528 = vunpack.c.l.b16 %v441
        %v529 = vunpack.c.l.b16 %v442
        %v530 = vunpack.c.l.b16 %v443
        %v531 = vpack.c.b16 %v516, %v515
        %v532 = vpack.c.b16 %v518, %v517
        %v533 = vpack.c.b16 %v520, %v519
        %v534 = vpack.c.b16 %v522, %v521
        %v535 = vpack.c.b16 %v524, %v523
        %v536 = vpack.c.b16 %v526, %v525
        %v537 = vpack.c.b16 %v528, %v527
        %v538 = vpack.c.b16 %v530, %v529
        %547 = vmatprep.subr.bf16.mxu0 0
        %548 = vmatpush1.bf16.msra.mxu0 %v538
        %549 = vmatprep.subr.bf16.mxu0 0
        %550 = vmatpush1.bf16.msra.mxu0 %v537
        %551 = vmatprep.subr.bf16.mxu0 0
        %552 = vmatpush1.bf16.msra.mxu0 %v536
        %553 = vmatprep.subr.bf16.mxu0 0
        %554 = vmatpush1.bf16.msra.mxu0 %v535
        %555 = vmatprep.subr.bf16.mxu0 0
        %556 = vmatpush1.bf16.msra.mxu0 %v534
        %557 = vmatprep.subr.bf16.mxu0 0
        %558 = vmatpush1.bf16.msra.mxu0 %v533
        %559 = vmatprep.subr.bf16.mxu0 0
        %560 = vmatpush1.bf16.msra.mxu0 %v532
        %561 = vmatprep.subr.bf16.mxu0 0
        %562 = vmatpush1.bf16.msra.mxu0 %v531
        %563 = vmatprep.subr.bf16.mxu0 0
        %564 = vmatpush2.bf16.msra.mxu0 0
        %565 = vmatprep.subr.bf16.mxu0 0
        %566 = vmatpush2.bf16.msra.mxu0 0
        %567 = vmatprep.subr.bf16.mxu0 0
        %568 = vmatpush2.bf16.msra.mxu0 0
        %569 = vmatprep.subr.bf16.mxu0 0
        %570 = vmatpush2.bf16.msra.mxu0 0
        %571 = vmatprep.subr.bf16.mxu0 0
        %572 = vmatpush2.bf16.msra.mxu0 0
        %573 = vmatprep.subr.bf16.mxu0 0
        %574 = vmatpush2.bf16.msra.mxu0 0
        %575 = vmatprep.subr.bf16.mxu0 0
        %576 = vmatpush2.bf16.msra.mxu0 0
        %577 = vmatprep.subr.bf16.mxu0 0
        %578 = vmatpush2.bf16.msra.mxu0 0
        %579 = vmatprep.mubr.bf16.mxu0 0
        %580 = vmatmul.mubr.bf16.gmra.mxu0 %v483
        %v581 = vpop.f32.mrf.mxu0
        %v582 = vadd.f32 %v449, %v581
        %v583 = vpop.f32.mrf.mxu0
        %v584 = vpop.f32.mrf.mxu0
        %v585 = vadd.f32 %v449, %v584
        %v586 = vpop.f32.mrf.mxu0
        %587 = vmatprep.mubr.bf16.mxu0 0
        %588 = vmatmul.mubr.bf16.gmra.mxu0 %v484
        %v589 = vpop.f32.mrf.mxu0
        %v590 = vadd.f32 %v449, %v589
        %v591 = vpop.f32.mrf.mxu0
        %v592 = vpop.f32.mrf.mxu0
        %v593 = vadd.f32 %v449, %v592
        %v594 = vpop.f32.mrf.mxu0
        %595 = vmatprep.mubr.bf16.mxu0 0
        %596 = vmatmul.mubr.bf16.gmra.mxu0 %v485
        %v597 = vpop.f32.mrf.mxu0
        %v598 = vadd.f32 %v449, %v597
        %v599 = vpop.f32.mrf.mxu0
        %v600 = vpop.f32.mrf.mxu0
        %v601 = vadd.f32 %v449, %v600
        %v602 = vpop.f32.mrf.mxu0
        %603 = vmatprep.mubr.bf16.mxu0 0
        %604 = vmatmul.mubr.bf16.gmra.mxu0 %v486
        %v605 = vpop.f32.mrf.mxu0
        %v606 = vadd.f32 %v449, %v605
        %v607 = vpop.f32.mrf.mxu0
        %v608 = vpop.f32.mrf.mxu0
        %v609 = vadd.f32 %v449, %v608
        %v610 = vpop.f32.mrf.mxu0
        %611 = vmatprep.mubr.bf16.mxu0 0
        %612 = vmatmul.mubr.bf16.gmra.mxu0 %v487
        %v613 = vpop.f32.mrf.mxu0
        %v614 = vadd.f32 %v449, %v613
        %v615 = vpop.f32.mrf.mxu0
        %v616 = vpop.f32.mrf.mxu0
        %v617 = vadd.f32 %v449, %v616
        %v618 = vpop.f32.mrf.mxu0
        %619 = vmatprep.mubr.bf16.mxu0 0
        %620 = vmatmul.mubr.bf16.gmra.mxu0 %v488
        %v621 = vpop.f32.mrf.mxu0
        %v622 = vadd.f32 %v449, %v621
        %v623 = vpop.f32.mrf.mxu0
        %v624 = vpop.f32.mrf.mxu0
        %v625 = vadd.f32 %v449, %v624
        %v626 = vpop.f32.mrf.mxu0
        %627 = vmatprep.mubr.bf16.mxu0 0
        %628 = vmatmul.mubr.bf16.gmra.mxu0 %v489
        %v629 = vpop.f32.mrf.mxu0
        %v630 = vadd.f32 %v449, %v629
        %v631 = vpop.f32.mrf.mxu0
        %v632 = vpop.f32.mrf.mxu0
        %v633 = vadd.f32 %v449, %v632
        %v634 = vpop.f32.mrf.mxu0
        %635 = vmatprep.mubr.bf16.mxu0 0
        %636 = vmatmul.mubr.bf16.gmra.mxu0 %v490
        %v637 = vpop.f32.mrf.mxu0
        %v638 = vadd.f32 %v449, %v637
        %v639 = vpop.f32.mrf.mxu0
        %v640 = vpop.f32.mrf.mxu0
        %v641 = vadd.f32 %v449, %v640
        %v642 = vpop.f32.mrf.mxu0
        %643 = vdwg.mxu0
        %v644 = vsub.f32 0.0, %v582
        %v645 = vsub.f32 0.0, %v585
        %v646 = vsub.f32 0.0, %v590
        %v647 = vsub.f32 0.0, %v593
        %v648 = vsub.f32 0.0, %v598
        %v649 = vsub.f32 0.0, %v601
        %v650 = vsub.f32 0.0, %v606
        %v651 = vsub.f32 0.0, %v609
        %v652 = vsub.f32 0.0, %v614
        %v653 = vsub.f32 0.0, %v617
        %v654 = vsub.f32 0.0, %v622
        %v655 = vsub.f32 0.0, %v625
        %v656 = vsub.f32 0.0, %v630
        %v657 = vsub.f32 0.0, %v633
        %v658 = vsub.f32 0.0, %v638
        %v659 = vsub.f32 0.0, %v641
        %v660 = vmul.f32 %v644, 1.442695
        %v661 = vpow.pop %v660
        %v662 = vmul.f32 %v645, 1.442695
        %v663 = vpow.pop %v662
        %v664 = vmul.f32 %v646, 1.442695
        %v665 = vpow.pop %v664
        %v666 = vmul.f32 %v647, 1.442695
        %v667 = vpow.pop %v666
        %v668 = vmul.f32 %v648, 1.442695
        %v669 = vpow.pop %v668
        %v670 = vmul.f32 %v649, 1.442695
        %v671 = vpow.pop %v670
        %v672 = vmul.f32 %v650, 1.442695
        %v673 = vpow.pop %v672
        %v674 = vmul.f32 %v651, 1.442695
        %v675 = vpow.pop %v674
        %v676 = vmul.f32 %v652, 1.442695
        %v677 = vpow.pop %v676
        %v678 = vmul.f32 %v653, 1.442695
        %v679 = vpow.pop %v678
        %v680 = vmul.f32 %v654, 1.442695
        %v681 = vpow.pop %v680
        %v682 = vmul.f32 %v655, 1.442695
        %v683 = vpow.pop %v682
        %v684 = vmul.f32 %v656, 1.442695
        %v685 = vpow.pop %v684
        %v686 = vmul.f32 %v657, 1.442695
        %v687 = vpow.pop %v686
        %v688 = vmul.f32 %v658, 1.442695
        %v689 = vpow.pop %v688
        %v690 = vmul.f32 %v659, 1.442695
        %v691 = vpow.pop %v690
        %v692 = vadd.f32 %v661, 1.0
        %v693 = vadd.f32 %v663, 1.0
        %v694 = vadd.f32 %v665, 1.0
        %v695 = vadd.f32 %v667, 1.0
        %v696 = vadd.f32 %v669, 1.0
        %v697 = vadd.f32 %v671, 1.0
        %v698 = vadd.f32 %v673, 1.0
        %v699 = vadd.f32 %v675, 1.0
        %v700 = vadd.f32 %v677, 1.0
        %v701 = vadd.f32 %v679, 1.0
        %v702 = vadd.f32 %v681, 1.0
        %v703 = vadd.f32 %v683, 1.0
        %v704 = vadd.f32 %v685, 1.0
        %v705 = vadd.f32 %v687, 1.0
        %v706 = vadd.f32 %v689, 1.0
        %v707 = vadd.f32 %v691, 1.0
        %v708 = vrcp.pop %v692
        %v709 = vrcp.pop %v693
        %v710 = vrcp.pop %v694
        %v711 = vrcp.pop %v695
        %v712 = vrcp.pop %v696
        %v713 = vrcp.pop %v697
        %v714 = vrcp.pop %v698
        %v715 = vrcp.pop %v699
        %v716 = vrcp.pop %v700
        %v717 = vrcp.pop %v701
        %v718 = vrcp.pop %v702
        %v719 = vrcp.pop %v703
        %v720 = vrcp.pop %v704
        %v721 = vrcp.pop %v705
        %v722 = vrcp.pop %v706
        %v723 = vrcp.pop %v707
        %v724 = vpack.c.bf16 %v709, %v708
        %v725 = vpack.c.bf16 %v711, %v710
        %v726 = vpack.c.bf16 %v713, %v712
        %v727 = vpack.c.bf16 %v715, %v714
        %v728 = vpack.c.bf16 %v717, %v716
        %v729 = vpack.c.bf16 %v719, %v718
        %v730 = vpack.c.bf16 %v721, %v720
        %v731 = vpack.c.bf16 %v723, %v722
        %v732 = vld [vmem:[#allocation7] sm:$0xf]
        %v733 = vld [vmem:[#allocation7 + $0x4] sm:$0xf]
        %v734 = vld [vmem:[#allocation7 + $0x8] sm:$0xf]
        %v735 = vld [vmem:[#allocation7 + $0xc] sm:$0xf]
        %v736 = vld [vmem:[#allocation7 + $0x10] sm:$0xf]
        %v737 = vld [vmem:[#allocation7 + $0x14] sm:$0xf]
        %v738 = vld [vmem:[#allocation7 + $0x18] sm:$0xf]
        %v739 = vld [vmem:[#allocation7 + $0x1c] sm:$0xf]
        %v740 = vld [vmem:[#allocation7 + $0x20] sm:$0xf]
        %v741 = vld [vmem:[#allocation7 + $0x24] sm:$0xf]
        %v742 = vld [vmem:[#allocation7 + $0x28] sm:$0xf]
        %v743 = vld [vmem:[#allocation7 + $0x2c] sm:$0xf]
        %v744 = vld [vmem:[#allocation7 + $0x30] sm:$0xf]
        %v745 = vld [vmem:[#allocation7 + $0x34] sm:$0xf]
        %v746 = vld [vmem:[#allocation7 + $0x38] sm:$0xf]
        %v747 = vld [vmem:[#allocation7 + $0x3c] sm:$0xf]
        %v748 = vld [vmem:[%s4] sm:$0x1]
        %v750 = vlaneseq
        %v751 = vshrl.u32 %v750, 7
        %v752 = vsub.s32 0, %v751
        %v753 = vrot.slane %v748, %v752
        %v771 = vunpack.c.l.b16 %v732
        %v772 = vunpack.c.l.b16 %v733
        %v773 = vunpack.c.l.b16 %v734
        %v774 = vunpack.c.l.b16 %v735
        %v775 = vunpack.c.l.b16 %v736
        %v776 = vunpack.c.l.b16 %v737
        %v777 = vunpack.c.l.b16 %v738
        %v778 = vunpack.c.l.b16 %v739
        %v779 = vunpack.c.l.b16 %v740
        %v780 = vunpack.c.l.b16 %v741
        %v781 = vunpack.c.l.b16 %v742
        %v782 = vunpack.c.l.b16 %v743
        %v783 = vunpack.c.l.b16 %v744
        %v784 = vunpack.c.l.b16 %v745
        %v785 = vunpack.c.l.b16 %v746
        %v786 = vunpack.c.l.b16 %v747
        %v787 = vpack.c.b16 %v772, %v771
        %v788 = vpack.c.b16 %v774, %v773
        %v789 = vpack.c.b16 %v776, %v775
        %v790 = vpack.c.b16 %v778, %v777
        %v791 = vpack.c.b16 %v780, %v779
        %v792 = vpack.c.b16 %v782, %v781
        %v793 = vpack.c.b16 %v784, %v783
        %v794 = vpack.c.b16 %v786, %v785
        %803 = vmatprep.subr.bf16.mxu0 0
        %804 = vmatpush1.bf16.msra.mxu0 %v794
        %805 = vmatprep.subr.bf16.mxu0 0
        %806 = vmatpush1.bf16.msra.mxu0 %v793
        %807 = vmatprep.subr.bf16.mxu0 0
        %808 = vmatpush1.bf16.msra.mxu0 %v792
        %809 = vmatprep.subr.bf16.mxu0 0
        %810 = vmatpush1.bf16.msra.mxu0 %v791
        %811 = vmatprep.subr.bf16.mxu0 0
        %812 = vmatpush1.bf16.msra.mxu0 %v790
        %813 = vmatprep.subr.bf16.mxu0 0
        %814 = vmatpush1.bf16.msra.mxu0 %v789
        %815 = vmatprep.subr.bf16.mxu0 0
        %816 = vmatpush1.bf16.msra.mxu0 %v788
        %817 = vmatprep.subr.bf16.mxu0 0
        %818 = vmatpush1.bf16.msra.mxu0 %v787
        %819 = vmatprep.subr.bf16.mxu0 0
        %820 = vmatpush2.bf16.msra.mxu0 0
        %821 = vmatprep.subr.bf16.mxu0 0
        %822 = vmatpush2.bf16.msra.mxu0 0
        %823 = vmatprep.subr.bf16.mxu0 0
        %824 = vmatpush2.bf16.msra.mxu0 0
        %825 = vmatprep.subr.bf16.mxu0 0
        %826 = vmatpush2.bf16.msra.mxu0 0
        %827 = vmatprep.subr.bf16.mxu0 0
        %828 = vmatpush2.bf16.msra.mxu0 0
        %829 = vmatprep.subr.bf16.mxu0 0
        %830 = vmatpush2.bf16.msra.mxu0 0
        %831 = vmatprep.subr.bf16.mxu0 0
        %832 = vmatpush2.bf16.msra.mxu0 0
        %833 = vmatprep.subr.bf16.mxu0 0
        %834 = vmatpush2.bf16.msra.mxu0 0
        %835 = vmatprep.mubr.bf16.mxu0 0
        %836 = vmatmul.mubr.bf16.gmra.mxu0 %v724
        %v837 = vpop.f32.mrf.mxu0
        %v838 = vadd.f32 %v753, %v837
        %v839 = vpop.f32.mrf.mxu0
        %v840 = vpop.f32.mrf.mxu0
        %v841 = vadd.f32 %v753, %v840
        %v842 = vpop.f32.mrf.mxu0
        %843 = vmatprep.mubr.bf16.mxu0 0
        %844 = vmatmul.mubr.bf16.gmra.mxu0 %v725
        %v845 = vpop.f32.mrf.mxu0
        %v846 = vadd.f32 %v753, %v845
        %v847 = vpop.f32.mrf.mxu0
        %v848 = vpop.f32.mrf.mxu0
        %v849 = vadd.f32 %v753, %v848
        %v850 = vpop.f32.mrf.mxu0
        %851 = vmatprep.mubr.bf16.mxu0 0
        %852 = vmatmul.mubr.bf16.gmra.mxu0 %v726
        %v853 = vpop.f32.mrf.mxu0
        %v854 = vadd.f32 %v753, %v853
        %v855 = vpop.f32.mrf.mxu0
        %v856 = vpop.f32.mrf.mxu0
        %v857 = vadd.f32 %v753, %v856
        %v858 = vpop.f32.mrf.mxu0
        %859 = vmatprep.mubr.bf16.mxu0 0
        %860 = vmatmul.mubr.bf16.gmra.mxu0 %v727
        %v861 = vpop.f32.mrf.mxu0
        %v862 = vadd.f32 %v753, %v861
        %v863 = vpop.f32.mrf.mxu0
        %v864 = vpop.f32.mrf.mxu0
        %v865 = vadd.f32 %v753, %v864
        %v866 = vpop.f32.mrf.mxu0
        %867 = vmatprep.mubr.bf16.mxu0 0
        %868 = vmatmul.mubr.bf16.gmra.mxu0 %v728
        %v869 = vpop.f32.mrf.mxu0
        %v870 = vadd.f32 %v753, %v869
        %v871 = vpop.f32.mrf.mxu0
        %v872 = vpop.f32.mrf.mxu0
        %v873 = vadd.f32 %v753, %v872
        %v874 = vpop.f32.mrf.mxu0
        %875 = vmatprep.mubr.bf16.mxu0 0
        %876 = vmatmul.mubr.bf16.gmra.mxu0 %v729
        %v877 = vpop.f32.mrf.mxu0
        %v878 = vadd.f32 %v753, %v877
        %v879 = vpop.f32.mrf.mxu0
        %v880 = vpop.f32.mrf.mxu0
        %v881 = vadd.f32 %v753, %v880
        %v882 = vpop.f32.mrf.mxu0
        %883 = vmatprep.mubr.bf16.mxu0 0
        %884 = vmatmul.mubr.bf16.gmra.mxu0 %v730
        %v885 = vpop.f32.mrf.mxu0
        %v886 = vadd.f32 %v753, %v885
        %v887 = vpop.f32.mrf.mxu0
        %v888 = vpop.f32.mrf.mxu0
        %v889 = vadd.f32 %v753, %v888
        %v890 = vpop.f32.mrf.mxu0
        %891 = vmatprep.mubr.bf16.mxu0 0
        %892 = vmatmul.mubr.bf16.gmra.mxu0 %v731
        %v893 = vpop.f32.mrf.mxu0
        %v894 = vadd.f32 %v753, %v893
        %v895 = vpop.f32.mrf.mxu0
        %v896 = vpop.f32.mrf.mxu0
        %v897 = vadd.f32 %v753, %v896
        %v898 = vpop.f32.mrf.mxu0
        %899 = vdwg.mxu0
        %v900 = vsub.f32 0.0, %v838
        %v901 = vsub.f32 0.0, %v841
        %v902 = vsub.f32 0.0, %v846
        %v903 = vsub.f32 0.0, %v849
        %v904 = vsub.f32 0.0, %v854
        %v905 = vsub.f32 0.0, %v857
        %v906 = vsub.f32 0.0, %v862
        %v907 = vsub.f32 0.0, %v865
        %v908 = vsub.f32 0.0, %v870
        %v909 = vsub.f32 0.0, %v873
        %v910 = vsub.f32 0.0, %v878
        %v911 = vsub.f32 0.0, %v881
        %v912 = vsub.f32 0.0, %v886
        %v913 = vsub.f32 0.0, %v889
        %v914 = vsub.f32 0.0, %v894
        %v915 = vsub.f32 0.0, %v897
        %v916 = vmul.f32 %v900, 1.442695
        %v917 = vpow.pop %v916
        %v918 = vmul.f32 %v901, 1.442695
        %v919 = vpow.pop %v918
        %v920 = vmul.f32 %v902, 1.442695
        %v921 = vpow.pop %v920
        %v922 = vmul.f32 %v903, 1.442695
        %v923 = vpow.pop %v922
        %v924 = vmul.f32 %v904, 1.442695
        %v925 = vpow.pop %v924
        %v926 = vmul.f32 %v905, 1.442695
        %v927 = vpow.pop %v926
        %v928 = vmul.f32 %v906, 1.442695
        %v929 = vpow.pop %v928
        %v930 = vmul.f32 %v907, 1.442695
        %v931 = vpow.pop %v930
        %v932 = vmul.f32 %v908, 1.442695
        %v933 = vpow.pop %v932
        %v934 = vmul.f32 %v909, 1.442695
        %v935 = vpow.pop %v934
        %v936 = vmul.f32 %v910, 1.442695
        %v937 = vpow.pop %v936
        %v938 = vmul.f32 %v911, 1.442695
        %v939 = vpow.pop %v938
        %v940 = vmul.f32 %v912, 1.442695
        %v941 = vpow.pop %v940
        %v942 = vmul.f32 %v913, 1.442695
        %v943 = vpow.pop %v942
        %v944 = vmul.f32 %v914, 1.442695
        %v945 = vpow.pop %v944
        %v946 = vmul.f32 %v915, 1.442695
        %v947 = vpow.pop %v946
        %v948 = vadd.f32 %v917, 1.0
        %v949 = vadd.f32 %v919, 1.0
        %v950 = vadd.f32 %v921, 1.0
        %v951 = vadd.f32 %v923, 1.0
        %v952 = vadd.f32 %v925, 1.0
        %v953 = vadd.f32 %v927, 1.0
        %v954 = vadd.f32 %v929, 1.0
        %v955 = vadd.f32 %v931, 1.0
        %v956 = vadd.f32 %v933, 1.0
        %v957 = vadd.f32 %v935, 1.0
        %v958 = vadd.f32 %v937, 1.0
        %v959 = vadd.f32 %v939, 1.0
        %v960 = vadd.f32 %v941, 1.0
        %v961 = vadd.f32 %v943, 1.0
        %v962 = vadd.f32 %v945, 1.0
        %v963 = vadd.f32 %v947, 1.0
        %v964 = vrcp.pop %v948
        %v965 = vrcp.pop %v949
        %v966 = vrcp.pop %v950
        %v967 = vrcp.pop %v951
        %v968 = vrcp.pop %v952
        %v969 = vrcp.pop %v953
        %v970 = vrcp.pop %v954
        %v971 = vrcp.pop %v955
        %v972 = vrcp.pop %v956
        %v973 = vrcp.pop %v957
        %v974 = vrcp.pop %v958
        %v975 = vrcp.pop %v959
        %v976 = vrcp.pop %v960
        %v977 = vrcp.pop %v961
        %v978 = vrcp.pop %v962
        %v979 = vrcp.pop %v963
        %v980 = vpack.c.bf16 %v965, %v964
        %v981 = vpack.c.bf16 %v967, %v966
        %v982 = vpack.c.bf16 %v969, %v968
        %v983 = vpack.c.bf16 %v971, %v970
        %v984 = vpack.c.bf16 %v973, %v972
        %v985 = vpack.c.bf16 %v975, %v974
        %v986 = vpack.c.bf16 %v977, %v976
        %v987 = vpack.c.bf16 %v979, %v978
        %v988 = vld [vmem:[#allocation8] sm:$0xf]
        %v989 = vld [vmem:[#allocation8 + $0x4] sm:$0xf]
        %v990 = vld [vmem:[#allocation8 + $0x8] sm:$0xf]
        %v991 = vld [vmem:[#allocation8 + $0xc] sm:$0xf]
        %v992 = vld [vmem:[#allocation8 + $0x10] sm:$0xf]
        %v993 = vld [vmem:[#allocation8 + $0x14] sm:$0xf]
        %v994 = vld [vmem:[#allocation8 + $0x18] sm:$0xf]
        %v995 = vld [vmem:[#allocation8 + $0x1c] sm:$0xf]
        %v996 = vld [vmem:[#allocation8 + $0x20] sm:$0xf]
        %v997 = vld [vmem:[#allocation8 + $0x24] sm:$0xf]
        %v998 = vld [vmem:[#allocation8 + $0x28] sm:$0xf]
        %v999 = vld [vmem:[#allocation8 + $0x2c] sm:$0xf]
        %v1000 = vld [vmem:[#allocation8 + $0x30] sm:$0xf]
        %v1001 = vld [vmem:[#allocation8 + $0x34] sm:$0xf]
        %v1002 = vld [vmem:[#allocation8 + $0x38] sm:$0xf]
        %v1003 = vld [vmem:[#allocation8 + $0x3c] sm:$0xf]
        %v1004 = vld [vmem:[%s6] sm:$0x1]
        %v1006 = vlaneseq
        %v1007 = vshrl.u32 %v1006, 7
        %v1008 = vsub.s32 0, %v1007
        %v1009 = vrot.slane %v1004, %v1008
        %v1027 = vunpack.c.l.b16 %v988
        %v1028 = vunpack.c.l.b16 %v989
        %v1029 = vunpack.c.l.b16 %v990
        %v1030 = vunpack.c.l.b16 %v991
        %v1031 = vunpack.c.l.b16 %v992
        %v1032 = vunpack.c.l.b16 %v993
        %v1033 = vunpack.c.l.b16 %v994
        %v1034 = vunpack.c.l.b16 %v995
        %v1035 = vunpack.c.l.b16 %v996
        %v1036 = vunpack.c.l.b16 %v997
        %v1037 = vunpack.c.l.b16 %v998
        %v1038 = vunpack.c.l.b16 %v999
        %v1039 = vunpack.c.l.b16 %v1000
        %v1040 = vunpack.c.l.b16 %v1001
        %v1041 = vunpack.c.l.b16 %v1002
        %v1042 = vunpack.c.l.b16 %v1003
        %v1043 = vpack.c.b16 %v1028, %v1027
        %v1044 = vpack.c.b16 %v1030, %v1029
        %v1045 = vpack.c.b16 %v1032, %v1031
        %v1046 = vpack.c.b16 %v1034, %v1033
        %v1047 = vpack.c.b16 %v1036, %v1035
        %v1048 = vpack.c.b16 %v1038, %v1037
        %v1049 = vpack.c.b16 %v1040, %v1039
        %v1050 = vpack.c.b16 %v1042, %v1041
        %1059 = vmatprep.subr.bf16.mxu0 0
        %1060 = vmatpush1.bf16.msra.mxu0 %v1050
        %1061 = vmatprep.subr.bf16.mxu0 0
        %1062 = vmatpush1.bf16.msra.mxu0 %v1049
        %1063 = vmatprep.subr.bf16.mxu0 0
        %1064 = vmatpush1.bf16.msra.mxu0 %v1048
        %1065 = vmatprep.subr.bf16.mxu0 0
        %1066 = vmatpush1.bf16.msra.mxu0 %v1047
        %1067 = vmatprep.subr.bf16.mxu0 0
        %1068 = vmatpush1.bf16.msra.mxu0 %v1046
        %1069 = vmatprep.subr.bf16.mxu0 0
        %1070 = vmatpush1.bf16.msra.mxu0 %v1045
        %1071 = vmatprep.subr.bf16.mxu0 0
        %1072 = vmatpush1.bf16.msra.mxu0 %v1044
        %1073 = vmatprep.subr.bf16.mxu0 0
        %1074 = vmatpush1.bf16.msra.mxu0 %v1043
        %1075 = vmatprep.subr.bf16.mxu0 0
        %1076 = vmatpush2.bf16.msra.mxu0 0
        %1077 = vmatprep.subr.bf16.mxu0 0
        %1078 = vmatpush2.bf16.msra.mxu0 0
        %1079 = vmatprep.subr.bf16.mxu0 0
        %1080 = vmatpush2.bf16.msra.mxu0 0
        %1081 = vmatprep.subr.bf16.mxu0 0
        %1082 = vmatpush2.bf16.msra.mxu0 0
        %1083 = vmatprep.subr.bf16.mxu0 0
        %1084 = vmatpush2.bf16.msra.mxu0 0
        %1085 = vmatprep.subr.bf16.mxu0 0
        %1086 = vmatpush2.bf16.msra.mxu0 0
        %1087 = vmatprep.subr.bf16.mxu0 0
        %1088 = vmatpush2.bf16.msra.mxu0 0
        %1089 = vmatprep.subr.bf16.mxu0 0
        %1090 = vmatpush2.bf16.msra.mxu0 0
        %1091 = vmatprep.mubr.bf16.mxu0 0
        %1092 = vmatmul.mubr.bf16.gmra.mxu0 %v980
        %v1093 = vpop.f32.mrf.mxu0
        %v1094 = vadd.f32 %v1009, %v1093
        %v1095 = vpop.f32.mrf.mxu0
        %v1096 = vpop.f32.mrf.mxu0
        %v1097 = vadd.f32 %v1009, %v1096
        %v1098 = vpop.f32.mrf.mxu0
        %1099 = vmatprep.mubr.bf16.mxu0 0
        %1100 = vmatmul.mubr.bf16.gmra.mxu0 %v981
        %v1101 = vpop.f32.mrf.mxu0
        %v1102 = vadd.f32 %v1009, %v1101
        %v1103 = vpop.f32.mrf.mxu0
        %v1104 = vpop.f32.mrf.mxu0
        %v1105 = vadd.f32 %v1009, %v1104
        %v1106 = vpop.f32.mrf.mxu0
        %1107 = vmatprep.mubr.bf16.mxu0 0
        %1108 = vmatmul.mubr.bf16.gmra.mxu0 %v982
        %v1109 = vpop.f32.mrf.mxu0
        %v1110 = vadd.f32 %v1009, %v1109
        %v1111 = vpop.f32.mrf.mxu0
        %v1112 = vpop.f32.mrf.mxu0
        %v1113 = vadd.f32 %v1009, %v1112
        %v1114 = vpop.f32.mrf.mxu0
        %1115 = vmatprep.mubr.bf16.mxu0 0
        %1116 = vmatmul.mubr.bf16.gmra.mxu0 %v983
        %v1117 = vpop.f32.mrf.mxu0
        %v1118 = vadd.f32 %v1009, %v1117
        %v1119 = vpop.f32.mrf.mxu0
        %v1120 = vpop.f32.mrf.mxu0
        %v1121 = vadd.f32 %v1009, %v1120
        %v1122 = vpop.f32.mrf.mxu0
        %1123 = vmatprep.mubr.bf16.mxu0 0
        %1124 = vmatmul.mubr.bf16.gmra.mxu0 %v984
        %v1125 = vpop.f32.mrf.mxu0
        %v1126 = vadd.f32 %v1009, %v1125
        %v1127 = vpop.f32.mrf.mxu0
        %v1128 = vpop.f32.mrf.mxu0
        %v1129 = vadd.f32 %v1009, %v1128
        %v1130 = vpop.f32.mrf.mxu0
        %1131 = vmatprep.mubr.bf16.mxu0 0
        %1132 = vmatmul.mubr.bf16.gmra.mxu0 %v985
        %v1133 = vpop.f32.mrf.mxu0
        %v1134 = vadd.f32 %v1009, %v1133
        %v1135 = vpop.f32.mrf.mxu0
        %v1136 = vpop.f32.mrf.mxu0
        %v1137 = vadd.f32 %v1009, %v1136
        %v1138 = vpop.f32.mrf.mxu0
        %1139 = vmatprep.mubr.bf16.mxu0 0
        %1140 = vmatmul.mubr.bf16.gmra.mxu0 %v986
        %v1141 = vpop.f32.mrf.mxu0
        %v1142 = vadd.f32 %v1009, %v1141
        %v1143 = vpop.f32.mrf.mxu0
        %v1144 = vpop.f32.mrf.mxu0
        %v1145 = vadd.f32 %v1009, %v1144
        %v1146 = vpop.f32.mrf.mxu0
        %1147 = vmatprep.mubr.bf16.mxu0 0
        %1148 = vmatmul.mubr.bf16.gmra.mxu0 %v987
        %v1149 = vpop.f32.mrf.mxu0
        %v1150 = vadd.f32 %v1009, %v1149
        %v1151 = vpop.f32.mrf.mxu0
        %v1152 = vpop.f32.mrf.mxu0
        %v1153 = vadd.f32 %v1009, %v1152
        %v1154 = vpop.f32.mrf.mxu0
        %1155 = vdwg.mxu0
        %v1156 = vsub.f32 0.0, %v1094
        %v1157 = vsub.f32 0.0, %v1097
        %v1158 = vsub.f32 0.0, %v1102
        %v1159 = vsub.f32 0.0, %v1105
        %v1160 = vsub.f32 0.0, %v1110
        %v1161 = vsub.f32 0.0, %v1113
        %v1162 = vsub.f32 0.0, %v1118
        %v1163 = vsub.f32 0.0, %v1121
        %v1164 = vsub.f32 0.0, %v1126
        %v1165 = vsub.f32 0.0, %v1129
        %v1166 = vsub.f32 0.0, %v1134
        %v1167 = vsub.f32 0.0, %v1137
        %v1168 = vsub.f32 0.0, %v1142
        %v1169 = vsub.f32 0.0, %v1145
        %v1170 = vsub.f32 0.0, %v1150
        %v1171 = vsub.f32 0.0, %v1153
        %v1172 = vmul.f32 %v1156, 1.442695
        %v1173 = vpow.pop %v1172
        %v1174 = vmul.f32 %v1157, 1.442695
        %v1175 = vpow.pop %v1174
        %v1176 = vmul.f32 %v1158, 1.442695
        %v1177 = vpow.pop %v1176
        %v1178 = vmul.f32 %v1159, 1.442695
        %v1179 = vpow.pop %v1178
        %v1180 = vmul.f32 %v1160, 1.442695
        %v1181 = vpow.pop %v1180
        %v1182 = vmul.f32 %v1161, 1.442695
        %v1183 = vpow.pop %v1182
        %v1184 = vmul.f32 %v1162, 1.442695
        %v1185 = vpow.pop %v1184
        %v1186 = vmul.f32 %v1163, 1.442695
        %v1187 = vpow.pop %v1186
        %v1188 = vmul.f32 %v1164, 1.442695
        %v1189 = vpow.pop %v1188
        %v1190 = vmul.f32 %v1165, 1.442695
        %v1191 = vpow.pop %v1190
        %v1192 = vmul.f32 %v1166, 1.442695
        %v1193 = vpow.pop %v1192
        %v1194 = vmul.f32 %v1167, 1.442695
        %v1195 = vpow.pop %v1194
        %v1196 = vmul.f32 %v1168, 1.442695
        %v1197 = vpow.pop %v1196
        %v1198 = vmul.f32 %v1169, 1.442695
        %v1199 = vpow.pop %v1198
        %v1200 = vmul.f32 %v1170, 1.442695
        %v1201 = vpow.pop %v1200
        %v1202 = vmul.f32 %v1171, 1.442695
        %v1203 = vpow.pop %v1202
        %v1204 = vadd.f32 %v1173, 1.0
        %v1205 = vadd.f32 %v1175, 1.0
        %v1206 = vadd.f32 %v1177, 1.0
        %v1207 = vadd.f32 %v1179, 1.0
        %v1208 = vadd.f32 %v1181, 1.0
        %v1209 = vadd.f32 %v1183, 1.0
        %v1210 = vadd.f32 %v1185, 1.0
        %v1211 = vadd.f32 %v1187, 1.0
        %v1212 = vadd.f32 %v1189, 1.0
        %v1213 = vadd.f32 %v1191, 1.0
        %v1214 = vadd.f32 %v1193, 1.0
        %v1215 = vadd.f32 %v1195, 1.0
        %v1216 = vadd.f32 %v1197, 1.0
        %v1217 = vadd.f32 %v1199, 1.0
        %v1218 = vadd.f32 %v1201, 1.0
        %v1219 = vadd.f32 %v1203, 1.0
        %v1220 = vrcp.pop %v1204
        %v1221 = vrcp.pop %v1205
        %v1222 = vrcp.pop %v1206
        %v1223 = vrcp.pop %v1207
        %v1224 = vrcp.pop %v1208
        %v1225 = vrcp.pop %v1209
        %v1226 = vrcp.pop %v1210
        %v1227 = vrcp.pop %v1211
        %v1228 = vrcp.pop %v1212
        %v1229 = vrcp.pop %v1213
        %v1230 = vrcp.pop %v1214
        %v1231 = vrcp.pop %v1215
        %v1232 = vrcp.pop %v1216
        %v1233 = vrcp.pop %v1217
        %v1234 = vrcp.pop %v1218
        %v1235 = vrcp.pop %v1219
        %v1236 = vpack.c.bf16 %v1221, %v1220
        %v1237 = vpack.c.bf16 %v1223, %v1222
        %v1238 = vpack.c.bf16 %v1225, %v1224
        %v1239 = vpack.c.bf16 %v1227, %v1226
        %v1240 = vpack.c.bf16 %v1229, %v1228
        %v1241 = vpack.c.bf16 %v1231, %v1230
        %v1242 = vpack.c.bf16 %v1233, %v1232
        %v1243 = vpack.c.bf16 %v1235, %v1234
        %v1244 = vld [vmem:[#allocation10] sm:$0xf]
        %v1245 = vld [vmem:[#allocation10 + $0x4] sm:$0xf]
        %v1246 = vld [vmem:[#allocation10 + $0x8] sm:$0xf]
        %v1247 = vld [vmem:[#allocation10 + $0xc] sm:$0xf]
        %v1248 = vld [vmem:[#allocation10 + $0x10] sm:$0xf]
        %v1249 = vld [vmem:[#allocation10 + $0x14] sm:$0xf]
        %v1250 = vld [vmem:[#allocation10 + $0x18] sm:$0xf]
        %v1251 = vld [vmem:[#allocation10 + $0x1c] sm:$0xf]
        %v1252 = vld [vmem:[#allocation10 + $0x20] sm:$0xf]
        %v1253 = vld [vmem:[#allocation10 + $0x24] sm:$0xf]
        %v1254 = vld [vmem:[#allocation10 + $0x28] sm:$0xf]
        %v1255 = vld [vmem:[#allocation10 + $0x2c] sm:$0xf]
        %v1256 = vld [vmem:[#allocation10 + $0x30] sm:$0xf]
        %v1257 = vld [vmem:[#allocation10 + $0x34] sm:$0xf]
        %v1258 = vld [vmem:[#allocation10 + $0x38] sm:$0xf]
        %v1259 = vld [vmem:[#allocation10 + $0x3c] sm:$0xf]
        %v1260 = vld [vmem:[%s8] sm:$0x1]
        %v1262 = vlaneseq
        %v1263 = vshrl.u32 %v1262, 7
        %v1264 = vsub.s32 0, %v1263
        %v1265 = vrot.slane %v1260, %v1264
        %v1283 = vunpack.c.l.b16 %v1244
        %v1284 = vunpack.c.l.b16 %v1245
        %v1285 = vunpack.c.l.b16 %v1246
        %v1286 = vunpack.c.l.b16 %v1247
        %v1287 = vunpack.c.l.b16 %v1248
        %v1288 = vunpack.c.l.b16 %v1249
        %v1289 = vunpack.c.l.b16 %v1250
        %v1290 = vunpack.c.l.b16 %v1251
        %v1291 = vunpack.c.l.b16 %v1252
        %v1292 = vunpack.c.l.b16 %v1253
        %v1293 = vunpack.c.l.b16 %v1254
        %v1294 = vunpack.c.l.b16 %v1255
        %v1295 = vunpack.c.l.b16 %v1256
        %v1296 = vunpack.c.l.b16 %v1257
        %v1297 = vunpack.c.l.b16 %v1258
        %v1298 = vunpack.c.l.b16 %v1259
        %v1299 = vpack.c.b16 %v1284, %v1283
        %v1300 = vpack.c.b16 %v1286, %v1285
        %v1301 = vpack.c.b16 %v1288, %v1287
        %v1302 = vpack.c.b16 %v1290, %v1289
        %v1303 = vpack.c.b16 %v1292, %v1291
        %v1304 = vpack.c.b16 %v1294, %v1293
        %v1305 = vpack.c.b16 %v1296, %v1295
        %v1306 = vpack.c.b16 %v1298, %v1297
        %1315 = vmatprep.subr.bf16.mxu0 0
        %1316 = vmatpush1.bf16.msra.mxu0 %v1306
        %1317 = vmatprep.subr.bf16.mxu0 0
        %1318 = vmatpush1.bf16.msra.mxu0 %v1305
        %1319 = vmatprep.subr.bf16.mxu0 0
        %1320 = vmatpush1.bf16.msra.mxu0 %v1304
        %1321 = vmatprep.subr.bf16.mxu0 0
        %1322 = vmatpush1.bf16.msra.mxu0 %v1303
        %1323 = vmatprep.subr.bf16.mxu0 0
        %1324 = vmatpush1.bf16.msra.mxu0 %v1302
        %1325 = vmatprep.subr.bf16.mxu0 0
        %1326 = vmatpush1.bf16.msra.mxu0 %v1301
        %1327 = vmatprep.subr.bf16.mxu0 0
        %1328 = vmatpush1.bf16.msra.mxu0 %v1300
        %1329 = vmatprep.subr.bf16.mxu0 0
        %1330 = vmatpush1.bf16.msra.mxu0 %v1299
        %1331 = vmatprep.subr.bf16.mxu0 0
        %1332 = vmatpush2.bf16.msra.mxu0 0
        %1333 = vmatprep.subr.bf16.mxu0 0
        %1334 = vmatpush2.bf16.msra.mxu0 0
        %1335 = vmatprep.subr.bf16.mxu0 0
        %1336 = vmatpush2.bf16.msra.mxu0 0
        %1337 = vmatprep.subr.bf16.mxu0 0
        %1338 = vmatpush2.bf16.msra.mxu0 0
        %1339 = vmatprep.subr.bf16.mxu0 0
        %1340 = vmatpush2.bf16.msra.mxu0 0
        %1341 = vmatprep.subr.bf16.mxu0 0
        %1342 = vmatpush2.bf16.msra.mxu0 0
        %1343 = vmatprep.subr.bf16.mxu0 0
        %1344 = vmatpush2.bf16.msra.mxu0 0
        %1345 = vmatprep.subr.bf16.mxu0 0
        %1346 = vmatpush2.bf16.msra.mxu0 0
        %1347 = vmatprep.mubr.bf16.mxu0 0
        %1348 = vmatmul.mubr.bf16.gmra.mxu0 %v1236
        %v1349 = vpop.f32.mrf.mxu0
        %v1350 = vadd.f32 %v1265, %v1349
        %v1351 = vpop.f32.mrf.mxu0
        %v1352 = vpop.f32.mrf.mxu0
        %v1353 = vadd.f32 %v1265, %v1352
        %v1354 = vpop.f32.mrf.mxu0
        %1355 = vmatprep.mubr.bf16.mxu0 0
        %1356 = vmatmul.mubr.bf16.gmra.mxu0 %v1237
        %v1357 = vpop.f32.mrf.mxu0
        %v1358 = vadd.f32 %v1265, %v1357
        %v1359 = vpop.f32.mrf.mxu0
        %v1360 = vpop.f32.mrf.mxu0
        %v1361 = vadd.f32 %v1265, %v1360
        %v1362 = vpop.f32.mrf.mxu0
        %1363 = vmatprep.mubr.bf16.mxu0 0
        %1364 = vmatmul.mubr.bf16.gmra.mxu0 %v1238
        %v1365 = vpop.f32.mrf.mxu0
        %v1366 = vadd.f32 %v1265, %v1365
        %v1367 = vpop.f32.mrf.mxu0
        %v1368 = vpop.f32.mrf.mxu0
        %v1369 = vadd.f32 %v1265, %v1368
        %v1370 = vpop.f32.mrf.mxu0
        %1371 = vmatprep.mubr.bf16.mxu0 0
        %1372 = vmatmul.mubr.bf16.gmra.mxu0 %v1239
        %v1373 = vpop.f32.mrf.mxu0
        %v1374 = vadd.f32 %v1265, %v1373
        %v1375 = vpop.f32.mrf.mxu0
        %v1376 = vpop.f32.mrf.mxu0
        %v1377 = vadd.f32 %v1265, %v1376
        %v1378 = vpop.f32.mrf.mxu0
        %1379 = vmatprep.mubr.bf16.mxu0 0
        %1380 = vmatmul.mubr.bf16.gmra.mxu0 %v1240
        %v1381 = vpop.f32.mrf.mxu0
        %v1382 = vadd.f32 %v1265, %v1381
        %v1383 = vpop.f32.mrf.mxu0
        %v1384 = vpop.f32.mrf.mxu0
        %v1385 = vadd.f32 %v1265, %v1384
        %v1386 = vpop.f32.mrf.mxu0
        %1387 = vmatprep.mubr.bf16.mxu0 0
        %1388 = vmatmul.mubr.bf16.gmra.mxu0 %v1241
        %v1389 = vpop.f32.mrf.mxu0
        %v1390 = vadd.f32 %v1265, %v1389
        %v1391 = vpop.f32.mrf.mxu0
        %v1392 = vpop.f32.mrf.mxu0
        %v1393 = vadd.f32 %v1265, %v1392
        %v1394 = vpop.f32.mrf.mxu0
        %1395 = vmatprep.mubr.bf16.mxu0 0
        %1396 = vmatmul.mubr.bf16.gmra.mxu0 %v1242
        %v1397 = vpop.f32.mrf.mxu0
        %v1398 = vadd.f32 %v1265, %v1397
        %v1399 = vpop.f32.mrf.mxu0
        %v1400 = vpop.f32.mrf.mxu0
        %v1401 = vadd.f32 %v1265, %v1400
        %v1402 = vpop.f32.mrf.mxu0
        %1403 = vmatprep.mubr.bf16.mxu0 0
        %1404 = vmatmul.mubr.bf16.gmra.mxu0 %v1243
        %v1405 = vpop.f32.mrf.mxu0
        %v1406 = vadd.f32 %v1265, %v1405
        %v1407 = vpop.f32.mrf.mxu0
        %v1408 = vpop.f32.mrf.mxu0
        %v1409 = vadd.f32 %v1265, %v1408
        %v1410 = vpop.f32.mrf.mxu0
        %1411 = vdwg.mxu0
        %1412 = vst [vmem:[%s408] sm:$0xff] %v1350
        %1413 = vst [vmem:[%s408 + $0x8] sm:$0xff] %v1353
        %1414 = vst [vmem:[%s408 + $0x10] sm:$0xff] %v1358
        %1415 = vst [vmem:[%s408 + $0x18] sm:$0xff] %v1361
        %1416 = vst [vmem:[%s408 + $0x20] sm:$0xff] %v1366
        %1417 = vst [vmem:[%s408 + $0x28] sm:$0xff] %v1369
        %1418 = vst [vmem:[%s408 + $0x30] sm:$0xff] %v1374
        %1419 = vst [vmem:[%s408 + $0x38] sm:$0xff] %v1377
        %1420 = vst [vmem:[%s408 + $0x40] sm:$0xff] %v1382
        %1421 = vst [vmem:[%s408 + $0x48] sm:$0xff] %v1385
        %1422 = vst [vmem:[%s408 + $0x50] sm:$0xff] %v1390
        %1423 = vst [vmem:[%s408 + $0x58] sm:$0xff] %v1393
        %1424 = vst [vmem:[%s408 + $0x60] sm:$0xff] %v1398
        %1425 = vst [vmem:[%s408 + $0x68] sm:$0xff] %v1401
        %1426 = vst [vmem:[%s408 + $0x70] sm:$0xff] %v1406
        %1427 = vst [vmem:[%s408 + $0x78] sm:$0xff] %v1409
        %s1428 = sand.u32 %s230, 1
        %s1429 = scalar_lea.sflag [#allocation4], %s1428
        %s1430 = sand.u32 %s230, 1
        %s1431 = smul.addr %s1430, 128
        %s1432 = scalar_lea.vmem [#allocation11], %s1431
        // Predicated region
        $region77: #{tpu_custom_call.1} parent=55 // pred_check
          %p1433 = pneg %p240
        $region78: #{tpu_custom_call.1} parent=55 // pred_check_branch
          %1435 = sbr.rel (%p1433) target = $region80
        $region79: #{tpu_custom_call.1} parent=55 // pred_region
          %s1436 = smul.u32 16, %s28
          %s1438 = ssub.s32 2048, 2048
          %1439 = vsyncadd %s1429, %s1438
          %s1440 = smul.addr %s1436, 128
          %s1441 = scalar_lea.hbm %s9, %s1440
          %s1442 = sshll.u32 %s1432, 4
          %s1443 = int_to_ptr.vmem [resolvable:$true] %s1442
          %1448 = dma.vmem_to_hbm [thread:$0]  %s1443, 2048, %s1441, %s1429, 128, 128, 8
        $region80: #{tpu_custom_call.1} parent=55 // pred_fallthru
          _
      $region56: #{tpu_custom_call.1} parent=5 // pred_fallthru
        _
      %p1449 = scmp.le.s32.totalorder 2, %s23
      // Predicated region
      $region81: #{tpu_custom_call.1} parent=5 // pred_check
        %p1450 = pneg %p1449
      $region82: #{tpu_custom_call.1} parent=5 // pred_check_branch
        %1452 = sbr.rel (%p1450) target = $region84
      $region83: #{tpu_custom_call.1} parent=5 // pred_region
        %s1453 = ssub.s32 %s23, 2
        // Predicated region
        $region85: #{tpu_custom_call.1} parent=83 // pred_check
          %p1454 = pneg %p246
        $region86: #{tpu_custom_call.1} parent=83 // pred_check_branch
          %1456 = sbr.rel (%p1454) target = $region88
        $region87: #{tpu_custom_call.1} parent=83 // pred_region
          %s1457 = sand.u32 %s231, 1
          %s1458 = scalar_lea.sflag [#allocation4], %s1457
          %s1459 = sand.u32 %s231, 1
          %s1460 = smul.addr %s1459, 128
          %s1461 = scalar_lea.vmem [#allocation11], %s1460
          %1462 = dma.done %s1458, 2048
        $region88: #{tpu_custom_call.1} parent=83 // pred_fallthru
          _
      $region84: #{tpu_custom_call.1} parent=5 // pred_fallthru
        _
    $region6: #{tpu_custom_call.1} parent=1 // loop_footer
      %s27 = sadd.s32 1, %s23
    $region7: #{tpu_custom_call.1} parent=1 // loop_footer_branch
      %22 = sbr.rel target = $region3
    $region8: #{tpu_custom_call.1} parent=1 // loop_exit
      _
    %1463 = vsyncpa [#allocation3], 1
    %s1464 = scalar_lea.sflag [#allocation3], 1
    %1465 = vsyncpa %s1464, 1
    %1466 = vsyncpa [#allocation6], 1
    %1467 = vsyncpa [#allocation9], 1
    %1468 = vsyncpa [#allocation4], 1
    %s1469 = scalar_lea.sflag [#allocation4], 1
    %1470 = vsyncpa %s1469, 1

</llo_original>
